<compile_context>
chip_gen: v6e
topology: v6e:2x2x1
jax: 0.10.0
libtpu: 0.0.40
codegen_flags: <defaults>
</compile_context>

<pallas_src>
import jax
import jax.numpy as jnp
from jax import lax
from jax.experimental import pallas as pl
from jax.experimental.pallas import tpu as pltpu


_MIB = 1024 * 1024


def _vmem_capacity_bytes():
    """Physical VMEM per TensorCore; conservative fallback if query fails."""
    try:
        info = pltpu.get_tpu_info()
        for attr in ("vmem_capacity_bytes", "vmem_bytes", "vmem_size_bytes"):
            v = getattr(info, attr, None)
            if isinstance(v, int) and v > 0:
                return v
    except Exception:
        pass
    return 64 * _MIB  # v7x-sized (smallest of v5e/v6e/v7x) -> safe everywhere


# ---------------------------------------------------------------------------
# Pass 1: per-batch statistics -> per-channel scale / shift.
# ---------------------------------------------------------------------------
def _stats_kernel(eps, inv_n, L, tl):
    ragged = (L % tl) != 0  # static: only emit mask code when the tail is ragged

    def kernel(x_ref, gamma_ref, beta_ref, scale_ref, shift_ref,
               sum_ref, sq_ref):
        l = pl.program_id(1)

        @pl.when(l == 0)
        def _():
            sum_ref[...] = jnp.zeros_like(sum_ref)
            sq_ref[...] = jnp.zeros_like(sq_ref)

        x = x_ref[...].astype(jnp.float32)                  # (C, tl) tile
        if ragged:
            # Mask out-of-range lanes of the last tile (padded region is
            # unspecified and could contain NaN/Inf; where() blocks it).
            lane = lax.broadcasted_iota(jnp.int32, x.shape, 1) + l * tl
            x = jnp.where(lane < L, x, 0.0)

        # Per-channel partial sums (VPU adds over lane-groups; one lane reduce
        # per step).  Full reduction to a scalar is deferred to the epilogue.
        sum_ref[...] += jnp.sum(x, axis=1, keepdims=True)    # (C, 1) f32
        sq_ref[...] += jnp.sum(x * x, axis=1, keepdims=True)  # (C, 1) f32

        @pl.when(l == pl.num_programs(1) - 1)
        def _():
            # E[x^2] - E[x]^2 with f32 accumulation; `inv_n` uses the true
            # (unpadded) element count.
            mean = jnp.sum(sum_ref[...], keepdims=True) * inv_n       # (1, 1)
            ex2 = jnp.sum(sq_ref[...], keepdims=True) * inv_n
            var = jnp.maximum(ex2 - mean * mean, 0.0)
            inv_std = lax.rsqrt(var + eps)
            gamma = gamma_ref[...]                                    # (C, 1) f32
            beta = beta_ref[...]                                      # (C, 1) f32
            scale = gamma * inv_std
            scale_ref[...] = scale
            shift_ref[...] = beta - mean * scale
    return kernel


# ---------------------------------------------------------------------------
# Pass 2: y = x * scale + shift (per-channel affine, f32 math, cast on store).
# ---------------------------------------------------------------------------
def _normalize_kernel(x_ref, scale_ref, shift_ref, o_ref):
    scale = scale_ref[...]                                   # (C, 1) f32
    shift = shift_ref[...]                                   # (C, 1) f32
    y = x_ref[...].astype(jnp.float32) * scale + shift
    o_ref[...] = y.astype(o_ref.dtype)


# ---------------------------------------------------------------------------
# Fused single-pass kernel: slab-resident, one HBM read + one write.
# ---------------------------------------------------------------------------
def _fused_kernel(eps, inv_n):
    def kernel(x_ref, gamma_ref, beta_ref, o_ref):
        x = x_ref[...].astype(jnp.float32)                   # (C, L)
        mean = jnp.sum(x, keepdims=True) * inv_n              # (1, 1)
        ex2 = jnp.sum(x * x, keepdims=True) * inv_n
        var = jnp.maximum(ex2 - mean * mean, 0.0)             # no centered temp
        inv_std = lax.rsqrt(var + eps)
        gamma = gamma_ref[...]                                 # (C, 1) f32
        beta = beta_ref[...]
        scale = gamma * inv_std
        shift = beta - mean * scale
        o_ref[...] = (x * scale + shift).astype(o_ref.dtype)
    return kernel


# ---------------------------------------------------------------------------
# Tiled two-pass path.
# ---------------------------------------------------------------------------
def _glayernorm_tiled(x, gamma2d, beta2d, eps, inv_n,
                      target_tile_bytes, vmem_budget):
    B, C, L = x.shape
    itemsize = jnp.dtype(x.dtype).itemsize
    row_in = max(C * itemsize, 1)

    # Pass-2 VMEM cost model: 2 input + 2 output block buffers (x dtype) plus
    # ~2 f32 element temporaries per lane; fixed cost for lane-padded
    # scale/shift blocks plus margin.
    per_lane_pass2 = 4 * row_in + 2 * C * 4
    fixed_pass2 = 4 * C * 128 * 4 + 2 * _MIB

    l_up = ((L + 127) // 128) * 128
    cap_target = max(128, (target_tile_bytes // row_in) // 128 * 128)
    if vmem_budget > fixed_pass2:
        cap_vmem = max(128, ((vmem_budget - fixed_pass2) // per_lane_pass2)
                       // 128 * 128)
    else:
        cap_vmem = 128
    # TODO(synk): add a C-tiling grid axis for very large channel counts where
    # even a 128-lane tile exceeds the VMEM budget (mainly v5e).
    tl = int(min(l_up, cap_target, cap_vmem))
    n_l = (L + tl - 1) // tl

    pass1_need = 2 * C * tl * itemsize + C * tl * 4 + 4 * C * 128 * 4 + 2 * _MIB
    pass2_need = per_lane_pass2 * tl + fixed_pass2
    vmem_limit1 = int(min(vmem_budget, max(32 * _MIB, pass1_need + 4 * _MIB)))
    vmem_limit2 = int(min(vmem_budget, max(32 * _MIB, pass2_need + 4 * _MIB)))

    # ---- Pass 1: per-batch scale / shift -----------------------------------
    scale, shift = pl.pallas_call(
        _stats_kernel(eps, inv_n, L, tl),
        out_shape=(jax.ShapeDtypeStruct((B, C, 1), jnp.float32),
                   jax.ShapeDtypeStruct((B, C, 1), jnp.float32)),
        grid_spec=pltpu.PrefetchScalarGridSpec(
            num_scalar_prefetch=0,
            grid=(B, n_l),
            in_specs=[
                pl.BlockSpec((None, C, tl), lambda b, l: (b, 0, l)),
                pl.BlockSpec((C, 1), lambda b, l: (0, 0)),
                pl.BlockSpec((C, 1), lambda b, l: (0, 0)),
            ],
            out_specs=[
                pl.BlockSpec((None, C, 1), lambda b, l: (b, 0, 0)),
                pl.BlockSpec((None, C, 1), lambda b, l: (b, 0, 0)),
            ],
            scratch_shapes=[pltpu.VMEM((C, 1), jnp.float32),
                            pltpu.VMEM((C, 1), jnp.float32)],
        ),
        compiler_params=pltpu.CompilerParams(
            dimension_semantics=("parallel", "arbitrary"),
            vmem_limit_bytes=vmem_limit1),
        cost_estimate=pl.CostEstimate(
            flops=3 * B * C * L,
            transcendentals=B,
            bytes_accessed=B * C * L * itemsize + 2 * B * C * 4),
    )(x, gamma2d, beta2d)
    # TODO(synk): for B < num TensorCores (v7x small-batch), split the pass-1 L
    # reduction across a second parallel axis so both cores share the read.

    # ---- Pass 2: apply affine (masked edge stores handle ragged L) ---------
    out = pl.pallas_call(
        _normalize_kernel,
        out_shape=jax.ShapeDtypeStruct((B, C, L), x.dtype),
        grid_spec=pltpu.PrefetchScalarGridSpec(
            num_scalar_prefetch=0,
            grid=(B, n_l),
            in_specs=[
                pl.BlockSpec((None, C, tl), lambda b, l: (b, 0, l)),
                pl.BlockSpec((None, C, 1), lambda b, l: (b, 0, 0)),
                pl.BlockSpec((None, C, 1), lambda b, l: (b, 0, 0)),
            ],
            out_specs=pl.BlockSpec((None, C, tl), lambda b, l: (b, 0, l)),
        ),
        compiler_params=pltpu.CompilerParams(
            dimension_semantics=("parallel", "parallel"),
            vmem_limit_bytes=vmem_limit2),
        cost_estimate=pl.CostEstimate(
            flops=2 * B * C * L,
            transcendentals=0,
            bytes_accessed=2 * B * C * L * itemsize),
    )(x, scale, shift)
    return out


def _glayernorm_fused(x, gamma2d, beta2d, eps, inv_n, vmem_limit):
    B, C, L = x.shape
    itemsize = jnp.dtype(x.dtype).itemsize
    return pl.pallas_call(
        _fused_kernel(eps, inv_n),
        out_shape=jax.ShapeDtypeStruct((B, C, L), x.dtype),
        grid_spec=pltpu.PrefetchScalarGridSpec(
            num_scalar_prefetch=0,
            grid=(B,),
            in_specs=[
                pl.BlockSpec((None, C, L), lambda b: (b, 0, 0)),
                pl.BlockSpec((C, 1), lambda b: (0, 0)),
                pl.BlockSpec((C, 1), lambda b: (0, 0)),
            ],
            out_specs=pl.BlockSpec((None, C, L), lambda b: (b, 0, 0)),
        ),
        compiler_params=pltpu.CompilerParams(
            dimension_semantics=("parallel",),
            vmem_limit_bytes=int(vmem_limit)),
        cost_estimate=pl.CostEstimate(
            flops=6 * B * C * L,
            transcendentals=B,
            bytes_accessed=2 * B * C * L * itemsize),
    )(x, gamma2d, beta2d)


def glayernorm(x, gamma, beta, eps=1e-5, *,
               target_tile_bytes=2 * _MIB,
               force_tiled=False):
    """Global layer norm.  x: [B, C, L]; gamma/beta: [C].

    `force_tiled` is a testing hook to exercise the tiled two-pass path on
    shapes that would otherwise take the fused slab-resident path.
    """
    if x.ndim != 3:
        raise RuntimeError("GLayerNorm only accepts 3-D tensor as input")
    B, C, L = x.shape
    itemsize = jnp.dtype(x.dtype).itemsize
    gamma2d = jnp.asarray(gamma).reshape(C, 1).astype(jnp.float32)
    beta2d = jnp.asarray(beta).reshape(C, 1).astype(jnp.float32)
    inv_n = 1.0 / float(C * L)

    vmem_budget = int(_vmem_capacity_bytes() * 3 // 4)

    # Fused (single-read) path whenever the per-batch slab fits the budget:
    # 2 in + 2 out double-buffered slabs plus f32 temporaries inside the body.
    slab_bytes = C * L * itemsize
    fused_need = 4 * slab_bytes + 2 * C * L * 4 + 2 * _MIB
    if (not force_tiled) and fused_need <= vmem_budget:
        vmem_limit = min(vmem_budget, max(32 * _MIB, fused_need + 4 * _MIB))
        return _glayernorm_fused(x, gamma2d, beta2d, eps, inv_n, vmem_limit)

    return _glayernorm_tiled(x, gamma2d, beta2d, eps, inv_n,
                             target_tile_bytes, vmem_budget)


def glayernorm_ref(x, gamma, beta, eps=1e-5):
    """Pure-JAX reference mirroring the PyTorch module exactly."""
    s = jnp.transpose(x, (0, 2, 1))  # [B, L, C]
    mean = jnp.mean(s, axis=(1, 2), keepdims=True)
    var = jnp.mean((s - mean) ** 2, axis=(1, 2), keepdims=True)
    s = (s - mean) / jnp.sqrt(var + eps) * gamma + beta
    return jnp.transpose(s, (0, 2, 1))  # [B, C, L]


if __name__ == "__main__":
    eps = 1e-5
    key = jax.random.PRNGKey(0)
    k1, k2, k3, k4 = jax.random.split(key, 4)

    # Case 1: tiny slab, awkward L -> fused single-read path.
    B, C, L = 2, 4, 16
    x1 = jax.random.normal(k1, (B, C, L), dtype=jnp.float32)
    g1 = jnp.ones((C,), dtype=jnp.float32)    # reset_parameters(): ones / zeros
    b1 = jnp.zeros((C,), dtype=jnp.float32)
    out1 = jax.block_until_ready(glayernorm(x1, g1, b1, eps=eps))
    ref1 = glayernorm_ref(x1, g1, b1, eps=eps)
    assert out1.shape == (B, C, L)
    assert jnp.allclose(out1, ref1, atol=1e-5, rtol=1e-5), "fused path mismatch"

    # Case 2: tiled two-pass path, multiple aligned length tiles (exercises the
    # cross-tile accumulator).
    B2, C2, L2 = 2, 8, 256
    x2 = jax.random.normal(k2, (B2, C2, L2), dtype=jnp.float32)
    g2 = 1.0 + 0.1 * jax.random.normal(k3, (C2,), dtype=jnp.float32)
    b2 = 0.1 * jax.random.normal(k4, (C2,), dtype=jnp.float32)
    out2 = jax.block_until_ready(
        glayernorm(x2, g2, b2, eps=eps, target_tile_bytes=4096, force_tiled=True))
    ref2 = glayernorm_ref(x2, g2, b2, eps=eps)
    assert jnp.allclose(out2, ref2, atol=1e-5, rtol=1e-5), "tiled path mismatch"

    # Case 3: tiled path with a ragged length tail (no pad/slice: in-kernel lane
    # mask for the stats pass, Pallas edge-masked stores for the normalize pass).
    B3, C3, L3 = 2, 8, 200
    x3 = jax.random.normal(k3, (B3, C3, L3), dtype=jnp.float32)
    g3 = jnp.ones((C3,), dtype=jnp.float32)
    b3 = jnp.zeros((C3,), dtype=jnp.float32)
    out3 = jax.block_until_ready(
        glayernorm(x3, g3, b3, eps=eps, target_tile_bytes=4096, force_tiled=True))
    ref3 = glayernorm_ref(x3, g3, b3, eps=eps)
    assert out3.shape == (B3, C3, L3)
    assert jnp.allclose(out3, ref3, atol=1e-5, rtol=1e-5), "ragged tiled path mismatch"

    print("KERNEL_OK")
</pallas_src>

<mosaic_0001>
module attributes {stable_mosaic.version = 11 : i64} {
  func.func @kernel(%arg0: i32, %arg1: memref<1x4x16xf32, #tpu.memory_space<vmem>>, %arg2: memref<4x1xf32, #tpu.memory_space<vmem>>, %arg3: memref<4x1xf32, #tpu.memory_space<vmem>>, %arg4: memref<1x4x16xf32, #tpu.memory_space<vmem>>) attributes {dimension_semantics = [#tpu.dimension_semantics<parallel>], iteration_bounds = array<i64: 2>, scalar_prefetch = 0 : i64, scratch_operands = 0 : i64, tpu.core_type = #tpu.core_type<tc>, window_params = [{transform_indices = @transform_0, window_bounds = array<i64: 1, 4, 16>}, {pipeline_mode = #tpu.pipeline_mode<synchronous>, transform_indices = @transform_1, window_bounds = array<i64: 4, 1>}, {pipeline_mode = #tpu.pipeline_mode<synchronous>, transform_indices = @transform_2, window_bounds = array<i64: 4, 1>}, {transform_indices = @transform_3, window_bounds = array<i64: 1, 4, 16>}]} {
    %c0 = arith.constant 0 : index
    %c0_0 = arith.constant 0 : index
    %c0_1 = arith.constant 0 : index
    %0 = vector.load %arg1[%c0, %c0_0, %c0_1] : memref<1x4x16xf32, #tpu.memory_space<vmem>>, vector<1x4x16xf32>
    %1 = vector.shape_cast %0 : vector<1x4x16xf32> to vector<4x16xf32>
    %2 = vector.shape_cast %1 : vector<4x16xf32> to vector<1x4x16xf32>
    %cst = arith.constant dense<0.000000e+00> : vector<1xf32>
    %3 = vector.multi_reduction <add>, %2, %cst [1, 2] : vector<1x4x16xf32> to vector<1xf32>
    %4 = vector.shape_cast %3 : vector<1xf32> to vector<1x1x1xf32>
    %5 = vector.extract %4[0, 0, 0] : f32 from vector<1x1x1xf32>
    %6 = vector.broadcast %5 : f32 to vector<1x1xf32>
    %cst_2 = arith.constant 1.562500e-02 : f32
    %7 = vector.broadcast %cst_2 : f32 to vector<1x1xf32>
    %8 = arith.mulf %6, %7 : vector<1x1xf32>
    %9 = arith.mulf %1, %1 : vector<4x16xf32>
    %10 = vector.shape_cast %9 : vector<4x16xf32> to vector<1x4x16xf32>
    %cst_3 = arith.constant dense<0.000000e+00> : vector<1xf32>
    %11 = vector.multi_reduction <add>, %10, %cst_3 [1, 2] : vector<1x4x16xf32> to vector<1xf32>
    %12 = vector.shape_cast %11 : vector<1xf32> to vector<1x1x1xf32>
    %13 = vector.extract %12[0, 0, 0] : f32 from vector<1x1x1xf32>
    %14 = vector.broadcast %13 : f32 to vector<1x1xf32>
    %cst_4 = arith.constant 1.562500e-02 : f32
    %15 = vector.broadcast %cst_4 : f32 to vector<1x1xf32>
    %16 = arith.mulf %14, %15 : vector<1x1xf32>
    %17 = arith.mulf %8, %8 : vector<1x1xf32>
    %18 = arith.subf %16, %17 : vector<1x1xf32>
    %cst_5 = arith.constant 0.000000e+00 : f32
    %19 = vector.broadcast %cst_5 : f32 to vector<1x1xf32>
    %20 = arith.maximumf %18, %19 : vector<1x1xf32>
    %cst_6 = arith.constant 9.99999974E-6 : f32
    %21 = vector.broadcast %cst_6 : f32 to vector<1x1xf32>
    %22 = arith.addf %20, %21 : vector<1x1xf32>
    %23 = math.rsqrt %22 : vector<1x1xf32>
    %c0_7 = arith.constant 0 : index
    %c0_8 = arith.constant 0 : index
    %24 = vector.load %arg2[%c0_7, %c0_8] : memref<4x1xf32, #tpu.memory_space<vmem>>, vector<4x1xf32>
    %c0_9 = arith.constant 0 : index
    %c0_10 = arith.constant 0 : index
    %25 = vector.load %arg3[%c0_9, %c0_10] : memref<4x1xf32, #tpu.memory_space<vmem>>, vector<4x1xf32>
    %26 = vector.broadcast %23 : vector<1x1xf32> to vector<4x1xf32>
    %27 = arith.mulf %24, %26 : vector<4x1xf32>
    %28 = vector.broadcast %8 : vector<1x1xf32> to vector<4x1xf32>
    %29 = arith.mulf %28, %27 : vector<4x1xf32>
    %30 = arith.subf %25, %29 : vector<4x1xf32>
    %31 = vector.broadcast %27 : vector<4x1xf32> to vector<4x16xf32>
    %32 = arith.mulf %1, %31 : vector<4x16xf32>
    %33 = vector.broadcast %30 : vector<4x1xf32> to vector<4x16xf32>
    %34 = arith.addf %32, %33 : vector<4x16xf32>
    %c0_11 = arith.constant 0 : index
    %c0_12 = arith.constant 0 : index
    %c0_13 = arith.constant 0 : index
    %35 = vector.load %arg4[%c0_11, %c0_12, %c0_13] : memref<1x4x16xf32, #tpu.memory_space<vmem>>, vector<1x4x16xf32>
    %36 = vector.shape_cast %35 : vector<1x4x16xf32> to vector<4x16xf32>
    %37 = vector.shape_cast %34 : vector<4x16xf32> to vector<1x4x16xf32>
    tpu.vector_store %arg4[%c0_11, %c0_12, %c0_13], %37 {strides = array<i32>} : memref<1x4x16xf32, #tpu.memory_space<vmem>>, vector<1x4x16xf32>,
    return
  }
  func.func @transform_0(%arg0: i32) -> (i32, i32, i32) {
    %c0_i32 = arith.constant 0 : i32
    %c0_i32_0 = arith.constant 0 : i32
    %c0_i32_1 = arith.constant 0 : i32
    return %arg0, %c0_i32, %c0_i32_0 : i32, i32, i32
  }
  func.func @transform_1(%arg0: i32) -> (i32, i32) {
    %c0_i32 = arith.constant 0 : i32
    %c0_i32_0 = arith.constant 0 : i32
    %c0_i32_1 = arith.constant 0 : i32
    return %c0_i32, %c0_i32_0 : i32, i32
  }
  func.func @transform_2(%arg0: i32) -> (i32, i32) {
    %c0_i32 = arith.constant 0 : i32
    %c0_i32_0 = arith.constant 0 : i32
    %c0_i32_1 = arith.constant 0 : i32
    return %c0_i32, %c0_i32_0 : i32, i32
  }
  func.func @transform_3(%arg0: i32) -> (i32, i32, i32) {
    %c0_i32 = arith.constant 0 : i32
    %c0_i32_0 = arith.constant 0 : i32
    %c0_i32_1 = arith.constant 0 : i32
    return %arg0, %c0_i32, %c0_i32_0 : i32, i32, i32
  }
}

</mosaic_0001>

<llo_original>
// kernel: tpu_custom_call.1
$region0: #{tpu_custom_call.1}
  #allocation0 [shape = 'u32[]', space=smem, size = 0x4, offset = 0x4, fixed_abs, tag = 'smem constant byte address 0x4 - core index']
  #allocation1 [shape = 'u32[144,128]{1,0:T(1,128)}', space=vmem, size = 0x12000, scoped, tag = 'internal scratch']
  %s0 = inlined_call_operand.vmem [shape: f32[2,4,16], index: 0, kind: input, shape index: {}]
  %s1 = inlined_call_operand.vmem [shape: f32[4,1], index: 1, kind: input, shape index: {}]
  %s2 = inlined_call_operand.vmem [shape: f32[4,1], index: 2, kind: input, shape index: {}]
  %s3 = inlined_call_operand.hbm [shape: f32[2,4,16], index: 3, kind: output, shape index: {}]
  %s4 = sld [smem:[#allocation0]]
  $region45: #{tpu_custom_call.1} parent=0
    _
  %s6 = ssub.s32 1, %s4
  %s7 = scalar_select 0, %s6, %s4
  $region1: #{tpu_custom_call.1} parent=0
    #allocation2 [shape = 'u8[4096]{0}', space=vmem, size = 0x1000, scoped, tag = 'output window, operand 0']
    #allocation3 [shape = 's32[2]{0}', space=sflag, size = 0x8, scoped, tag = 'scoped memory for tpu_custom_call.1']
    %8 = vsyncpa [#allocation3], 0
    %s9 = scalar_lea.sflag [#allocation3], 1
    %10 = vsyncpa %s9, 0
    loop: start=0, step=1, limit=4
    $region2: #{tpu_custom_call.1} parent=1 // loop_pre_header
      _
    $region3: #{tpu_custom_call.1} parent=1 // loop_header
      %s12 = sphi 0, %s16
      %p13 = scmp.ge.s32.totalorder %s12, 4
      %s22 = sphi 0, %s24
      %s25 = sphi 0, %s22
      %s26 = sphi 0, %s25
      %s42 = sphi 0, %s26
      %s46 = sphi 0, %s46
      %s48 = sphi 0, %s46
      %s49 = sphi 0, %s48
      %s63 = sphi 0, %s49
      %s67 = sphi 0, %s67
      %s69 = sphi 0, %s67
      %s70 = sphi 0, %s69
      %s84 = sphi 0, %s70
      %s90 = sphi 0, %s92
      %s93 = sphi 0, %s90
      %s94 = sphi 0, %s93
      %s110 = sphi 0, %s94
    $region4: #{tpu_custom_call.1} parent=1 // loop_header_branch
      %15 = sbr.rel (%p13) target = $region8
    $region5: #{tpu_custom_call.1} parent=1 // loop_body
      %s17 = ssub.s32 %s12, 1
      %s18 = ssub.s32 %s12, 2
      %s19 = sadd.s32 %s12, 1
      %s20 = ssub.s32 %s12, %s19
      %p21 = scmp.eq.s32.totalorder %s20, 0
      %s23 = sadd.s32 %s22, 1
      %s24 = scalar_select %p21, %s22, %s23
      %p27 = pneg %p21
      %p28 = scmp.eq.s32.totalorder %s12, 1
      %p29 = por %p27, %p28
      %p30 = scmp.ne.s32.totalorder %s22, %s25
      %p31 = scmp.eq.s32.totalorder %s12, 0
      %p32 = por %p30, %p31
      %p33 = scmp.ne.s32.totalorder %s22, %s25
      %p34 = scmp.eq.s32.totalorder %s17, 1
      %p35 = por %p33, %p34
      %p36 = scmp.ne.s32.totalorder %s25, %s26
      %p37 = scmp.eq.s32.totalorder %s17, 0
      %p38 = por %p36, %p37
      %p39 = scmp.ne.s32.totalorder %s25, %s26
      %p40 = scmp.eq.s32.totalorder %s18, 1
      %p41 = por %p39, %p40
      %p43 = scmp.ne.s32.totalorder %s26, %s42
      %p44 = scmp.eq.s32.totalorder %s18, 0
      %p45 = por %p43, %p44
      %s47 = sadd.s32 %s46, 1
      %p50 = scmp.eq.s32.totalorder %s12, 1
      %p51 = scmp.ne.s32.totalorder %s46, %s48
      %p52 = scmp.eq.s32.totalorder %s12, 0
      %p53 = por %p51, %p52
      %p54 = scmp.ne.s32.totalorder %s46, %s48
      %p55 = scmp.eq.s32.totalorder %s17, 1
      %p56 = por %p54, %p55
      %p57 = scmp.ne.s32.totalorder %s48, %s49
      %p58 = scmp.eq.s32.totalorder %s17, 0
      %p59 = por %p57, %p58
      %p60 = scmp.ne.s32.totalorder %s48, %s49
      %p61 = scmp.eq.s32.totalorder %s18, 1
      %p62 = por %p60, %p61
      %p64 = scmp.ne.s32.totalorder %s49, %s63
      %p65 = scmp.eq.s32.totalorder %s18, 0
      %p66 = por %p64, %p65
      %s68 = sadd.s32 %s67, 1
      %p71 = scmp.eq.s32.totalorder %s12, 1
      %p72 = scmp.ne.s32.totalorder %s67, %s69
      %p73 = scmp.eq.s32.totalorder %s12, 0
      %p74 = por %p72, %p73
      %p75 = scmp.ne.s32.totalorder %s67, %s69
      %p76 = scmp.eq.s32.totalorder %s17, 1
      %p77 = por %p75, %p76
      %p78 = scmp.ne.s32.totalorder %s69, %s70
      %p79 = scmp.eq.s32.totalorder %s17, 0
      %p80 = por %p78, %p79
      %p81 = scmp.ne.s32.totalorder %s69, %s70
      %p82 = scmp.eq.s32.totalorder %s18, 1
      %p83 = por %p81, %p82
      %p85 = scmp.ne.s32.totalorder %s70, %s84
      %p86 = scmp.eq.s32.totalorder %s18, 0
      %p87 = por %p85, %p86
      %s88 = ssub.s32 %s12, %s19
      %p89 = scmp.eq.s32.totalorder %s88, 0
      %s91 = sadd.s32 %s90, 1
      %s92 = scalar_select %p89, %s90, %s91
      %p95 = pneg %p89
      %p96 = scmp.eq.s32.totalorder %s12, 1
      %p97 = por %p95, %p96
      %p98 = scmp.ne.s32.totalorder %s90, %s93
      %p99 = scmp.eq.s32.totalorder %s12, 0
      %p100 = por %p98, %p99
      %p101 = scmp.ne.s32.totalorder %s90, %s93
      %p102 = scmp.eq.s32.totalorder %s17, 1
      %p103 = por %p101, %p102
      %p104 = scmp.ne.s32.totalorder %s93, %s94
      %p105 = scmp.eq.s32.totalorder %s17, 0
      %p106 = por %p104, %p105
      %p107 = scmp.ne.s32.totalorder %s93, %s94
      %p108 = scmp.eq.s32.totalorder %s18, 1
      %p109 = por %p107, %p108
      %p111 = scmp.ne.s32.totalorder %s94, %s110
      %p112 = scmp.eq.s32.totalorder %s18, 0
      %p113 = por %p111, %p112
      %p114 = scmp.le.s32.totalorder 1, %s12
      %p115 = scmp.lt.s32.totalorder %s12, 3
      %p116 = pnand %p114, %p115
      %p117 = pneg %p116
      // Predicated region
      $region9: #{tpu_custom_call.1} parent=5 // pred_check
        _
      $region10: #{tpu_custom_call.1} parent=5 // pred_check_branch
        %119 = sbr.rel (%p116) target = $region12
      $region11: #{tpu_custom_call.1} parent=5 // pred_region
        %s120 = ssub.s32 %s12, 1
        // Predicated region
        $region13: #{tpu_custom_call.1} parent=11 // pred_check
          %p121 = pneg %p59
        $region14: #{tpu_custom_call.1} parent=11 // pred_check_branch
          %123 = sbr.rel (%p121) target = $region16
        $region15: #{tpu_custom_call.1} parent=11 // pred_region
          _
        $region16: #{tpu_custom_call.1} parent=11 // pred_fallthru
          _
        // Predicated region
        $region17: #{tpu_custom_call.1} parent=11 // pred_check
          %p124 = pneg %p80
        $region18: #{tpu_custom_call.1} parent=11 // pred_check_branch
          %126 = sbr.rel (%p124) target = $region20
        $region19: #{tpu_custom_call.1} parent=11 // pred_region
          _
        $region20: #{tpu_custom_call.1} parent=11 // pred_fallthru
          _
      $region12: #{tpu_custom_call.1} parent=5 // pred_fallthru
        _
      %p127 = scmp.lt.s32.totalorder %s12, 2
      // Predicated region
      $region21: #{tpu_custom_call.1} parent=5 // pred_check
        %p128 = pneg %p127
      $region22: #{tpu_custom_call.1} parent=5 // pred_check_branch
        %130 = sbr.rel (%p128) target = $region24
      $region23: #{tpu_custom_call.1} parent=5 // pred_region
        // Predicated region
        $region25: #{tpu_custom_call.1} parent=23 // pred_check
          %p131 = pneg %p32
        $region26: #{tpu_custom_call.1} parent=23 // pred_check_branch
          %133 = sbr.rel (%p131) target = $region28
        $region27: #{tpu_custom_call.1} parent=23 // pred_region
          %p134 = scmp.lt.s32.totalorder %s12, 1
          %s135 = scalar_select %p134, %s12, 1
          %s136 = smul.addr %s135, 4
          %s137 = scalar_lea.vmem %s0, %s136
        $region28: #{tpu_custom_call.1} parent=23 // pred_fallthru
          _
      $region24: #{tpu_custom_call.1} parent=5 // pred_fallthru
        _
      %p138 = scmp.le.s32.totalorder 1, %s12
      %p139 = scmp.lt.s32.totalorder %s12, 3
      %p140 = pnand %p138, %p139
      %p141 = pneg %p140
      // Predicated region
      $region29: #{tpu_custom_call.1} parent=5 // pred_check
        _
      $region30: #{tpu_custom_call.1} parent=5 // pred_check_branch
        %143 = sbr.rel (%p140) target = $region32
      $region31: #{tpu_custom_call.1} parent=5 // pred_region
        %s144 = ssub.s32 %s12, 1
        %p145 = scmp.lt.s32.totalorder %s17, 1
        %s146 = scalar_select %p145, %s17, 1
        %s147 = smul.addr %s146, 4
        %s148 = scalar_lea.vmem %s0, %s147
        %p149 = pneg %p38
        %p150 = pneg %p35
        %p151 = pneg %p59
        %p152 = pneg %p56
        %p153 = pneg %p80
        %p154 = pneg %p77
        %p155 = pneg %p106
        %p156 = pneg %p103
        %s157 = sand.u32 %s93, 1
        %s158 = scalar_lea.sflag [#allocation3], %s157
        %s159 = sand.u32 %s93, 1
        %s160 = smul.addr %s159, 4
        %s161 = scalar_lea.vmem [#allocation2], %s160
        %p162 = scmp.lt.s32.totalorder %s17, 1
        %s163 = scalar_select %p162, %s17, 1
        %s164 = smul.addr %s163, 4
        %s165 = scalar_lea.vmem %s0, %s164
        %v166 = vld [vmem:[%s165] sm:$0xf]
        %vm167 = vcmask 125952
        %v168 = vsel %vm167, %v166, 0.0
        %169 = vadd.xlane.f32.xlu0 %v168
        %v170 = vpop.xlane.xlu0 %169
        %v171 = vrot.slane %v170, 4
        %v172 = vadd.f32 %v170, %v171
        %v173 = vrot.slane %v172, 2
        %v174 = vadd.f32 %v172, %v173
        %v175 = vrot.slane %v174, 1
        %v176 = vadd.f32 %v174, %v175
        %s177 = vtos %v176
        %v178 = vstv %s177
        %v179 = vmul.f32 %v178, 0.015625
        %v180 = vmul.f32 %v166, %v166
        %v181 = vsel %vm167, %v180, 0.0
        %182 = vadd.xlane.f32.xlu0 %v181
        %v183 = vpop.xlane.xlu0 %182
        %v184 = vrot.slane %v183, 4
        %v185 = vadd.f32 %v183, %v184
        %v186 = vrot.slane %v185, 2
        %v187 = vadd.f32 %v185, %v186
        %v188 = vrot.slane %v187, 1
        %v189 = vadd.f32 %v187, %v188
        %s190 = vtos %v189
        %v191 = vstv %s190
        %v192 = vmul.f32 %v191, 0.015625
        %v193 = vmul.f32 %v179, %v179
        %v194 = vsub.f32 %v192, %v193
        %v195 = vmax.f32 %v194, 0.0
        %v196 = vadd.f32 %v195, 1e-05
        %v197 = vrsqrt.pop %v196
        %v198 = vld [vmem:[%s1] sm:$0xf]
        %v199 = vld [vmem:[%s2] sm:$0xf]
        %v200 = vmul.f32 %v198, %v197
        %v201 = vmul.f32 %v179, %v200
        %v202 = vsub.f32 %v199, %v201
        %204 = vset.pattern.permute.xlu0 0
        %205 = vperm.xlu0 %204, %v200
        %v206 = vpop.permute.xlu0 %205
        %v208 = vmul.f32 %v166, %v206
        %210 = vset.pattern.permute.xlu0 0
        %211 = vperm.xlu0 %210, %v202
        %v212 = vpop.permute.xlu0 %211
        %v214 = vadd.f32 %v208, %v212
        %215 = vst.msk [vmem:[%s161] sm:$0xf] %vm167, %v214
        %s216 = sand.u32 %s93, 1
        %s217 = scalar_lea.sflag [#allocation3], %s216
        %s218 = sand.u32 %s93, 1
        %s219 = smul.addr %s218, 4
        %s220 = scalar_lea.vmem [#allocation2], %s219
        // Predicated region
        $region33: #{tpu_custom_call.1} parent=31 // pred_check
          %p221 = pneg %p103
        $region34: #{tpu_custom_call.1} parent=31 // pred_check_branch
          %223 = sbr.rel (%p221) target = $region36
        $region35: #{tpu_custom_call.1} parent=31 // pred_region
          %s225 = ssub.s32 64, 64
          %226 = vsyncadd %s217, %s225
          %s227 = smul.addr %s17, 64
          %s228 = scalar_lea.hbm %s3, %s227
          %s230 = sshll.u32 %s220, 4
          %s231 = int_to_ptr.vmem [resolvable:$true] %s230
          %233 = dma.vmem_to_hbm [thread:$0]  %s231, 64, %s228, %s217
        $region36: #{tpu_custom_call.1} parent=31 // pred_fallthru
          _
      $region32: #{tpu_custom_call.1} parent=5 // pred_fallthru
        _
      %p234 = scmp.le.s32.totalorder 2, %s12
      // Predicated region
      $region37: #{tpu_custom_call.1} parent=5 // pred_check
        %p235 = pneg %p234
      $region38: #{tpu_custom_call.1} parent=5 // pred_check_branch
        %237 = sbr.rel (%p235) target = $region40
      $region39: #{tpu_custom_call.1} parent=5 // pred_region
        %s238 = ssub.s32 %s12, 2
        // Predicated region
        $region41: #{tpu_custom_call.1} parent=39 // pred_check
          %p239 = pneg %p109
        $region42: #{tpu_custom_call.1} parent=39 // pred_check_branch
          %241 = sbr.rel (%p239) target = $region44
        $region43: #{tpu_custom_call.1} parent=39 // pred_region
          %s242 = sand.u32 %s94, 1
          %s243 = scalar_lea.sflag [#allocation3], %s242
          %s244 = sand.u32 %s94, 1
          %s245 = smul.addr %s244, 4
          %s246 = scalar_lea.vmem [#allocation2], %s245
          %247 = dma.done %s243, 64
        $region44: #{tpu_custom_call.1} parent=39 // pred_fallthru
          _
      $region40: #{tpu_custom_call.1} parent=5 // pred_fallthru
        _
    $region6: #{tpu_custom_call.1} parent=1 // loop_footer
      %s16 = sadd.s32 1, %s12
    $region7: #{tpu_custom_call.1} parent=1 // loop_footer_branch
      %11 = sbr.rel target = $region3
    $region8: #{tpu_custom_call.1} parent=1 // loop_exit
      _
    %248 = vsyncpa [#allocation3], 1
    %s249 = scalar_lea.sflag [#allocation3], 1
    %250 = vsyncpa %s249, 1

</llo_original>
